<compile_context>
chip_gen: v6e
topology: v6e:2x2x1
jax: 0.10.0
libtpu: 0.0.40
codegen_flags: <defaults>
</compile_context>

<pallas_src>
import jax
import jax.numpy as jnp
from jax.experimental import pallas as pl
from jax.experimental.pallas import tpu as pltpu


class InterpolationType:
    NEAREST = 0
    BILINEAR = 1


# ----------------------------- Pallas matmul ------------------------------ #

def _round_up(v, m):
    return (v + m - 1) // m * m


def _pick_tile_mxu(d):
    """Tile for a lane-aligned matmul dim (K or N): 128 or 256.

    256 fills the v6e/v7x 2x256x256 MXU when the dim is large or already
    256-aligned; 128 otherwise (128 already saturates v5e's 4x128x128 and
    limits pad waste for awkward sizes).
    """
    if d <= 128:
        return 128
    if d % 256 == 0 or d >= 2048:
        return 256
    return 128


def _pick_tile_rows(m):
    """Tile for the M (= B*C) dim.

    Small B*C gets a short tile (multiple of 16 for bf16 sublane packing)
    instead of being padded to 128: fewer zero rows DMA'd, fewer wasted MXU
    push cycles.  Large M gets standard 128/256 tiles.
    """
    if m < 128:
        return _round_up(max(m, 1), 16)
    if m % 256 == 0 or m >= 2048:
        return 256
    return 128


def _matmul_kernel(a_ref, b_ref, o_ref):
    # Output block index (i, j) is constant across the innermost k axis, so
    # the block stays VMEM-resident: accumulate directly into it (no scratch).
    @pl.when(pl.program_id(2) == 0)
    def _():
        o_ref[...] = jnp.zeros_like(o_ref)

    o_ref[...] += jnp.dot(a_ref[...], b_ref[...],
                          preferred_element_type=jnp.float32)


def _pallas_matmul(a, b):
    """a: (M, K), b: (K, N) (bf16 operands) -> (M, N) float32 via tiled MXU."""
    M, K = a.shape
    K2, N = b.shape
    assert K == K2

    tm = _pick_tile_rows(M)
    tk = _pick_tile_mxu(K)
    tn = _pick_tile_mxu(N)
    Mp, Kp, Np = _round_up(M, tm), _round_up(K, tk), _round_up(N, tn)

    a_p = a if (Mp, Kp) == (M, K) else jnp.pad(a, ((0, Mp - M), (0, Kp - K)))
    b_p = b if (Kp, Np) == (K, N) else jnp.pad(b, ((0, Kp - K), (0, Np - N)))

    grid = (Mp // tm, Np // tn, Kp // tk)

    # Worst-case tiles (256,256): ~0.75 MiB double-buffered -> far below the
    # explicit 32 MiB limit, safe even on v7x's 64 MiB VMEM.
    bytes_accessed = int(a_p.size * a_p.dtype.itemsize * (Np // tn)
                         + b_p.size * b_p.dtype.itemsize * (Mp // tm)
                         + Mp * Np * 4)
    cost = pl.CostEstimate(flops=2 * Mp * Kp * Np,
                           transcendentals=0,
                           bytes_accessed=bytes_accessed)

    out = pl.pallas_call(
        _matmul_kernel,
        out_shape=jax.ShapeDtypeStruct((Mp, Np), jnp.float32),
        grid_spec=pltpu.PrefetchScalarGridSpec(
            num_scalar_prefetch=0,
            grid=grid,
            in_specs=[
                pl.BlockSpec((tm, tk), lambda i, j, k: (i, k)),
                pl.BlockSpec((tk, tn), lambda i, j, k: (k, j)),
            ],
            out_specs=pl.BlockSpec((tm, tn), lambda i, j, k: (i, j)),
        ),
        compiler_params=pltpu.CompilerParams(
            dimension_semantics=("parallel", "parallel", "arbitrary"),
            vmem_limit_bytes=32 * 1024 * 1024),
        cost_estimate=cost,
    )(a_p, b_p)

    if (Mp, Np) != (M, N):
        out = out[:M, :N]
    return out


# ------------------------- pooling-matrix glue ----------------------------- #

def build_pool_matrix(sample_map, H, W, interp):
    """Dense linear operator for "average of K interpolated samples".

    Returns shape (H*W, OH*OW) in bfloat16 (MXU operand dtype), used as the
    RHS of Y (B*C, OH*OW) = X (B*C, H*W) @ M^T.  The weights contributing to
    each output column sum to 1 (average of K interpolated samples).

    # TODO(synk): for very large H*W a sparse gather-style kernel (scalar-
    # prefetched corner indices/weights) would avoid this dense operator.
    """
    OH, OW, K, _ = sample_map.shape
    n_out = OH * OW
    sm = sample_map.reshape(n_out, K, 2).astype(jnp.float32)
    xs, ys = sm[..., 0], sm[..., 1]
    out_idx = jnp.broadcast_to(jnp.arange(n_out)[:, None], (n_out, K))
    inv_k = jnp.float32(1.0 / K)

    mat = jnp.zeros((H * W, n_out), jnp.float32)

    def scatter(m, xi, yi, w):
        in_idx = yi * W + xi
        return m.at[in_idx, out_idx].add(w)

    if interp == InterpolationType.NEAREST:
        # floor(x + 0.5): PyTorch-style nearest (not round-half-to-even).
        xi = jnp.clip(jnp.floor(xs + 0.5).astype(jnp.int32), 0, W - 1)
        yi = jnp.clip(jnp.floor(ys + 0.5).astype(jnp.int32), 0, H - 1)
        mat = scatter(mat, xi, yi, jnp.full_like(xs, inv_k))
    else:  # BILINEAR
        x0f, y0f = jnp.floor(xs), jnp.floor(ys)
        dx, dy = xs - x0f, ys - y0f
        x0r, y0r = x0f.astype(jnp.int32), y0f.astype(jnp.int32)
        x0 = jnp.clip(x0r, 0, W - 1)
        x1 = jnp.clip(x0r + 1, 0, W - 1)
        y0 = jnp.clip(y0r, 0, H - 1)
        y1 = jnp.clip(y0r + 1, 0, H - 1)
        for xi, yi, w in (
            (x0, y0, (1.0 - dx) * (1.0 - dy)),
            (x1, y0, dx * (1.0 - dy)),
            (x0, y1, (1.0 - dx) * dy),
            (x1, y1, dx * dy),
        ):
            mat = scatter(mat, xi, yi, w * inv_k)
    return mat.astype(jnp.bfloat16)


def mapped_avg_pool(x, sample_map, kernel_size,
                    interp=InterpolationType.BILINEAR, interp_weights=None,
                    pool_matrix=None):
    if interp_weights is not None:
        # TODO(synk): "unresampled" interpolation with explicit interp_weights
        # (extra interp-points dim on sample_map) is not implemented.
        raise NotImplementedError("interp_weights path not implemented")

    B, C, H, W = x.shape
    OH, OW, K, _ = sample_map.shape
    assert K == kernel_size, "sample_map kernel dim must equal kernel_size"

    if pool_matrix is None:
        pool_matrix = build_pool_matrix(sample_map, H, W, interp)

    # Y (B*C, OH*OW) = X (B*C, H*W) @ M^T (H*W, OH*OW)
    x_flat = x.reshape(B * C, H * W).astype(jnp.bfloat16)
    y = _pallas_matmul(x_flat, pool_matrix)               # (B*C, OH*OW) f32
    return y.reshape(B, C, OH, OW).astype(x.dtype)


class MappedAvgPool:
    def __init__(self, kernel_size, interpolation=InterpolationType.BILINEAR):
        self.kernel_size = kernel_size
        self.interp = interpolation
        self._pm_cache = {}  # pooling matrix depends only on sample_map/H/W

    def __call__(self, x, sample_map, interp_weights=None):
        B, C, H, W = x.shape
        key = (id(sample_map), H, W, self.interp)
        cached = self._pm_cache.get(key)
        if cached is None:
            pm = build_pool_matrix(sample_map, H, W, self.interp)
            # Keep sample_map alive so the id() key can't be reused.
            self._pm_cache[key] = (pm, sample_map)
        else:
            pm = cached[0]
        return mapped_avg_pool(x, sample_map, self.kernel_size, self.interp,
                               interp_weights, pool_matrix=pm)


# ------------------------------ reference ---------------------------------- #

def _reference_mapped_avg_pool(x, sample_map):
    """Pure-JAX f32 bilinear gather reference (no pooling matrix)."""
    B, C, H, W = x.shape
    xs = sample_map[..., 0].astype(jnp.float32)
    ys = sample_map[..., 1].astype(jnp.float32)
    x0f, y0f = jnp.floor(xs), jnp.floor(ys)
    dx, dy = xs - x0f, ys - y0f
    x0r, y0r = x0f.astype(jnp.int32), y0f.astype(jnp.int32)
    x0 = jnp.clip(x0r, 0, W - 1)
    x1 = jnp.clip(x0r + 1, 0, W - 1)
    y0 = jnp.clip(y0r, 0, H - 1)
    y1 = jnp.clip(y0r + 1, 0, H - 1)
    v00 = x[:, :, y0, x0]
    v10 = x[:, :, y0, x1]
    v01 = x[:, :, y1, x0]
    v11 = x[:, :, y1, x1]
    w00 = (1.0 - dx) * (1.0 - dy)
    w10 = dx * (1.0 - dy)
    w01 = (1.0 - dx) * dy
    w11 = dx * dy
    val = w00 * v00 + w10 * v10 + w01 * v01 + w11 * v11   # (B,C,OH,OW,K)
    return val.mean(axis=-1)


# -------------------------------- main -------------------------------------- #

if __name__ == "__main__":
    key = jax.random.PRNGKey(0)
    k_x, k_map = jax.random.split(key)

    B, C, H, W = 2, 4, 16, 16
    OH, OW, kernel_size = 8, 8, 4

    x = jax.random.normal(k_x, (B, C, H, W), dtype=jnp.float32)
    # Real-valued (x, y) sample coordinates inside the input plane.
    sample_map = jax.random.uniform(
        k_map, (OH, OW, kernel_size, 2), dtype=jnp.float32,
        minval=0.0, maxval=float(min(H, W) - 1))

    pool = MappedAvgPool(kernel_size, InterpolationType.BILINEAR)
    out = pool(x, sample_map)
    out = jax.block_until_ready(out)

    ref = _reference_mapped_avg_pool(x, sample_map)
    assert out.shape == (B, C, OH, OW), out.shape
    # bf16 MXU operands with f32 accumulation -> tolerance loosened vs f32 ref.
    max_err = float(jnp.max(jnp.abs(out - ref)))
    assert jnp.allclose(out, ref, atol=5e-2, rtol=5e-2), max_err

    print("KERNEL_OK")
</pallas_src>

<mosaic_0001>
module attributes {stable_mosaic.version = 11 : i64} {
  func.func @_matmul_kernel(%arg0: i32, %arg1: i32, %arg2: i32, %arg3: memref<16x256xbf16, #tpu.memory_space<vmem>>, %arg4: memref<256x128xbf16, #tpu.memory_space<vmem>>, %arg5: memref<16x128xf32, #tpu.memory_space<vmem>>) attributes {dimension_semantics = [#tpu.dimension_semantics<parallel>, #tpu.dimension_semantics<parallel>, #tpu.dimension_semantics<arbitrary>], iteration_bounds = array<i64: 1, 1, 1>, scalar_prefetch = 0 : i64, scratch_operands = 0 : i64, tpu.core_type = #tpu.core_type<tc>, window_params = [{transform_indices = @transform_0, window_bounds = array<i64: 16, 256>}, {transform_indices = @transform_1, window_bounds = array<i64: 256, 128>}, {transform_indices = @transform_2, window_bounds = array<i64: 16, 128>}]} {
    %c0_i32 = arith.constant 0 : i32
    %0 = arith.cmpi eq, %arg2, %c0_i32 : i32
    %1 = arith.extui %0 : i1 to i32
    %c0_i32_0 = arith.constant 0 : i32
    %2 = arith.cmpi ne, %1, %c0_i32_0 : i32
    scf.if %2 {
      %cst_8 = arith.constant 0.000000e+00 : f32
      %9 = vector.broadcast %cst_8 : f32 to vector<16x128xf32>
      %c0_9 = arith.constant 0 : index
      %c0_10 = arith.constant 0 : index
      %10 = vector.load %arg5[%c0_9, %c0_10] : memref<16x128xf32, #tpu.memory_space<vmem>>, vector<16x128xf32>
      tpu.vector_store %arg5[%c0_9, %c0_10], %9 {strides = array<i32>} : memref<16x128xf32, #tpu.memory_space<vmem>>, vector<16x128xf32>,
    } else {
    }
    %c0 = arith.constant 0 : index
    %c0_1 = arith.constant 0 : index
    %3 = vector.load %arg5[%c0, %c0_1] : memref<16x128xf32, #tpu.memory_space<vmem>>, vector<16x128xf32>
    %c0_2 = arith.constant 0 : index
    %c0_3 = arith.constant 0 : index
    %4 = vector.load %arg3[%c0_2, %c0_3] : memref<16x256xbf16, #tpu.memory_space<vmem>>, vector<16x256xbf16>
    %c0_4 = arith.constant 0 : index
    %c0_5 = arith.constant 0 : index
    %5 = vector.load %arg4[%c0_4, %c0_5] : memref<256x128xbf16, #tpu.memory_space<vmem>>, vector<256x128xbf16>
    %cst = arith.constant dense<0.000000e+00> : vector<16x128xf32>
    %6 = tpu.matmul %4, %5, %cst {dimension_numbers = #tpu.dot_dimension_numbers<[1], [0], [0], [1], [0, 0, 1, 1], [], []>} : vector<16x256xbf16>, vector<256x128xbf16>, vector<16x128xf32> -> vector<16x128xf32>
    %7 = arith.addf %3, %6 : vector<16x128xf32>
    %c0_6 = arith.constant 0 : index
    %c0_7 = arith.constant 0 : index
    %8 = vector.load %arg5[%c0_6, %c0_7] : memref<16x128xf32, #tpu.memory_space<vmem>>, vector<16x128xf32>
    tpu.vector_store %arg5[%c0_6, %c0_7], %7 {strides = array<i32>} : memref<16x128xf32, #tpu.memory_space<vmem>>, vector<16x128xf32>,
    return
  }
  func.func @transform_0(%arg0: i32, %arg1: i32, %arg2: i32) -> (i32, i32) {
    %c0_i32 = arith.constant 0 : i32
    return %arg0, %arg2 : i32, i32
  }
  func.func @transform_1(%arg0: i32, %arg1: i32, %arg2: i32) -> (i32, i32) {
    %c0_i32 = arith.constant 0 : i32
    return %arg2, %arg1 : i32, i32
  }
  func.func @transform_2(%arg0: i32, %arg1: i32, %arg2: i32) -> (i32, i32) {
    %c0_i32 = arith.constant 0 : i32
    return %arg0, %arg1 : i32, i32
  }
}

</mosaic_0001>

<llo_original>
// kernel: tpu_custom_call.1
$region0: #{tpu_custom_call.1}
  #allocation0 [shape = 'u32[]', space=smem, size = 0x4, offset = 0x4, fixed_abs, tag = 'smem constant byte address 0x4 - core index']
  #allocation1 [shape = 'u32[144,128]{1,0:T(1,128)}', space=vmem, size = 0x12000, scoped, tag = 'internal scratch']
  %s0 = inlined_call_operand.hbm [shape: bf16[16,256], index: 0, kind: input, shape index: {}]
  %s1 = inlined_call_operand.hbm [shape: bf16[256,128], index: 1, kind: input, shape index: {}]
  %s2 = inlined_call_operand.hbm [shape: f32[16,128], index: 2, kind: output, shape index: {}]
  %s3 = sld [smem:[#allocation0]]
  $region30: #{tpu_custom_call.1} parent=0
    _
  %s5 = ssub.s32 1, %s3
  %s6 = scalar_select 0, %s5, %s3
  $region1: #{tpu_custom_call.1} parent=0
    #allocation2 [shape = 'u8[8192]{0}', space=vmem, size = 0x2000, scoped, tag = 'input window, operand 0, single buffered']
    #allocation3 [shape = 's32[1]{0}', space=sflag, size = 0x4, scoped, tag = 'scoped memory for tpu_custom_call.1']
    #allocation4 [shape = 's32[1]{0}', space=sflag, size = 0x4, scoped, tag = 'scoped memory for tpu_custom_call.1']
    #allocation5 [shape = 'u8[65536]{0}', space=vmem, size = 0x10000, scoped, tag = 'input window, operand 1, single buffered']
    #allocation6 [shape = 's32[1]{0}', space=sflag, size = 0x4, scoped, tag = 'scoped memory for tpu_custom_call.1']
    #allocation7 [shape = 'u8[8192]{0}', space=vmem, size = 0x2000, scoped, tag = 'output window, operand 0, single buffered']
    %7 = vsyncpa [#allocation3], 0
    %8 = vsyncpa [#allocation6], 0
    %9 = vsyncpa [#allocation4], 0
    // Predicated region
    $region2: #{tpu_custom_call.1} parent=1 // pred_check
      _
    $region3: #{tpu_custom_call.1} parent=1 // pred_check_branch
      %11 = sbr.rel (0) target = $region5
    $region4: #{tpu_custom_call.1} parent=1 // pred_region
      %s13 = ssub.s32 256, 256
      %14 = vsyncadd [#allocation3], %s13
      %s15 = sshll.u32 [#allocation2], 4
      %s16 = int_to_ptr.vmem [resolvable:$true] %s15
      %21 = dma.hbm_to_vmem [thread:$0]  %s0, 256, %s16, [#allocation3], 128, 128, 8
    $region5: #{tpu_custom_call.1} parent=1 // pred_fallthru
      _
    // Predicated region
    $region6: #{tpu_custom_call.1} parent=1 // pred_check
      _
    $region7: #{tpu_custom_call.1} parent=1 // pred_check_branch
      %23 = sbr.rel (0) target = $region9
    $region8: #{tpu_custom_call.1} parent=1 // pred_region
      %s25 = ssub.s32 2048, 2048
      %26 = vsyncadd [#allocation6], %s25
      %s27 = sshll.u32 [#allocation5], 4
      %s28 = int_to_ptr.vmem [resolvable:$true] %s27
      %33 = dma.hbm_to_vmem [thread:$0]  %s1, 2048, %s28, [#allocation6], 64, 64, 4
    $region9: #{tpu_custom_call.1} parent=1 // pred_fallthru
      _
    // Predicated region
    $region10: #{tpu_custom_call.1} parent=1 // pred_check
      _
    $region11: #{tpu_custom_call.1} parent=1 // pred_check_branch
      %35 = sbr.rel (0) target = $region13
    $region12: #{tpu_custom_call.1} parent=1 // pred_region
      %36 = dma.done [#allocation3], 256
    $region13: #{tpu_custom_call.1} parent=1 // pred_fallthru
      _
    // Predicated region
    $region14: #{tpu_custom_call.1} parent=1 // pred_check
      _
    $region15: #{tpu_custom_call.1} parent=1 // pred_check_branch
      %38 = sbr.rel (0) target = $region17
    $region16: #{tpu_custom_call.1} parent=1 // pred_region
      %39 = dma.done [#allocation6], 2048
    $region17: #{tpu_custom_call.1} parent=1 // pred_fallthru
      _
    %p41 = scmp.eq.s32.totalorder 0, 0
    // Predicated region
    $region18: #{tpu_custom_call.1} parent=1 // pred_check
      %p42 = pneg %p41
    $region19: #{tpu_custom_call.1} parent=1 // pred_check_branch
      %44 = sbr.rel (%p42) target = $region21
    $region20: #{tpu_custom_call.1} parent=1 // pred_region
      %45 = vst [vmem:[#allocation7] sm:$0xff] 0.0
      %46 = vst [vmem:[#allocation7 + $0x8] sm:$0xff] 0.0
    $region21: #{tpu_custom_call.1} parent=1 // pred_fallthru
      _
    %v47 = vld [vmem:[#allocation7] sm:$0xff]
    %v48 = vld [vmem:[#allocation7 + $0x8] sm:$0xff]
    %v49 = vld [vmem:[#allocation2] sm:$0xff]
    %v50 = vld [vmem:[#allocation2 + $0x8] sm:$0xff]
    %v51 = vld [vmem:[#allocation5] sm:$0xf]
    %v52 = vld [vmem:[#allocation5 + $0x4] sm:$0xf]
    %v53 = vld [vmem:[#allocation5 + $0x8] sm:$0xf]
    %v54 = vld [vmem:[#allocation5 + $0xc] sm:$0xf]
    %v55 = vld [vmem:[#allocation5 + $0x10] sm:$0xf]
    %v56 = vld [vmem:[#allocation5 + $0x14] sm:$0xf]
    %v57 = vld [vmem:[#allocation5 + $0x18] sm:$0xf]
    %v58 = vld [vmem:[#allocation5 + $0x1c] sm:$0xf]
    %v59 = vld [vmem:[#allocation5 + $0x20] sm:$0xf]
    %v60 = vld [vmem:[#allocation5 + $0x24] sm:$0xf]
    %v61 = vld [vmem:[#allocation5 + $0x28] sm:$0xf]
    %v62 = vld [vmem:[#allocation5 + $0x2c] sm:$0xf]
    %v63 = vld [vmem:[#allocation5 + $0x30] sm:$0xf]
    %v64 = vld [vmem:[#allocation5 + $0x34] sm:$0xf]
    %v65 = vld [vmem:[#allocation5 + $0x38] sm:$0xf]
    %v66 = vld [vmem:[#allocation5 + $0x3c] sm:$0xf]
    %v67 = vld [vmem:[#allocation5 + $0x40] sm:$0xf]
    %v68 = vld [vmem:[#allocation5 + $0x44] sm:$0xf]
    %v69 = vld [vmem:[#allocation5 + $0x48] sm:$0xf]
    %v70 = vld [vmem:[#allocation5 + $0x4c] sm:$0xf]
    %v71 = vld [vmem:[#allocation5 + $0x50] sm:$0xf]
    %v72 = vld [vmem:[#allocation5 + $0x54] sm:$0xf]
    %v73 = vld [vmem:[#allocation5 + $0x58] sm:$0xf]
    %v74 = vld [vmem:[#allocation5 + $0x5c] sm:$0xf]
    %v75 = vld [vmem:[#allocation5 + $0x60] sm:$0xf]
    %v76 = vld [vmem:[#allocation5 + $0x64] sm:$0xf]
    %v77 = vld [vmem:[#allocation5 + $0x68] sm:$0xf]
    %v78 = vld [vmem:[#allocation5 + $0x6c] sm:$0xf]
    %v79 = vld [vmem:[#allocation5 + $0x70] sm:$0xf]
    %v80 = vld [vmem:[#allocation5 + $0x74] sm:$0xf]
    %v81 = vld [vmem:[#allocation5 + $0x78] sm:$0xf]
    %v82 = vld [vmem:[#allocation5 + $0x7c] sm:$0xf]
    %v85 = vunpack.c.l.b16 %v49
    %v86 = vunpack.c.h.b16 %v49
    %v87 = vunpack.c.l.b16 %v50
    %v88 = vunpack.c.h.b16 %v50
    %v89 = vpack.c.b16 %v87, %v85
    %v90 = vpack.c.b16 %v88, %v86
    %v125 = vunpack.c.l.b16 %v51
    %v126 = vunpack.c.l.b16 %v52
    %v127 = vunpack.c.l.b16 %v53
    %v128 = vunpack.c.l.b16 %v54
    %v129 = vunpack.c.l.b16 %v55
    %v130 = vunpack.c.l.b16 %v56
    %v131 = vunpack.c.l.b16 %v57
    %v132 = vunpack.c.l.b16 %v58
    %v133 = vunpack.c.l.b16 %v59
    %v134 = vunpack.c.l.b16 %v60
    %v135 = vunpack.c.l.b16 %v61
    %v136 = vunpack.c.l.b16 %v62
    %v137 = vunpack.c.l.b16 %v63
    %v138 = vunpack.c.l.b16 %v64
    %v139 = vunpack.c.l.b16 %v65
    %v140 = vunpack.c.l.b16 %v66
    %v141 = vunpack.c.l.b16 %v67
    %v142 = vunpack.c.l.b16 %v68
    %v143 = vunpack.c.l.b16 %v69
    %v144 = vunpack.c.l.b16 %v70
    %v145 = vunpack.c.l.b16 %v71
    %v146 = vunpack.c.l.b16 %v72
    %v147 = vunpack.c.l.b16 %v73
    %v148 = vunpack.c.l.b16 %v74
    %v149 = vunpack.c.l.b16 %v75
    %v150 = vunpack.c.l.b16 %v76
    %v151 = vunpack.c.l.b16 %v77
    %v152 = vunpack.c.l.b16 %v78
    %v153 = vunpack.c.l.b16 %v79
    %v154 = vunpack.c.l.b16 %v80
    %v155 = vunpack.c.l.b16 %v81
    %v156 = vunpack.c.l.b16 %v82
    %v157 = vpack.c.b16 %v126, %v125
    %v158 = vpack.c.b16 %v128, %v127
    %v159 = vpack.c.b16 %v130, %v129
    %v160 = vpack.c.b16 %v132, %v131
    %v161 = vpack.c.b16 %v134, %v133
    %v162 = vpack.c.b16 %v136, %v135
    %v163 = vpack.c.b16 %v138, %v137
    %v164 = vpack.c.b16 %v140, %v139
    %v165 = vpack.c.b16 %v142, %v141
    %v166 = vpack.c.b16 %v144, %v143
    %v167 = vpack.c.b16 %v146, %v145
    %v168 = vpack.c.b16 %v148, %v147
    %v169 = vpack.c.b16 %v150, %v149
    %v170 = vpack.c.b16 %v152, %v151
    %v171 = vpack.c.b16 %v154, %v153
    %v172 = vpack.c.b16 %v156, %v155
    %189 = vmatprep.subr.bf16.mxu0 0
    %190 = vmatpush1.bf16.msra.mxu0 %v164
    %191 = vmatprep.subr.bf16.mxu0 0
    %192 = vmatpush1.bf16.msra.mxu0 %v163
    %193 = vmatprep.subr.bf16.mxu0 0
    %194 = vmatpush1.bf16.msra.mxu0 %v162
    %195 = vmatprep.subr.bf16.mxu0 0
    %196 = vmatpush1.bf16.msra.mxu0 %v161
    %197 = vmatprep.subr.bf16.mxu0 0
    %198 = vmatpush1.bf16.msra.mxu0 %v160
    %199 = vmatprep.subr.bf16.mxu0 0
    %200 = vmatpush1.bf16.msra.mxu0 %v159
    %201 = vmatprep.subr.bf16.mxu0 0
    %202 = vmatpush1.bf16.msra.mxu0 %v158
    %203 = vmatprep.subr.bf16.mxu0 0
    %204 = vmatpush1.bf16.msra.mxu0 %v157
    %205 = vmatprep.subr.bf16.mxu0 0
    %206 = vmatpush2.bf16.msra.mxu0 %v172
    %207 = vmatprep.subr.bf16.mxu0 0
    %208 = vmatpush2.bf16.msra.mxu0 %v171
    %209 = vmatprep.subr.bf16.mxu0 0
    %210 = vmatpush2.bf16.msra.mxu0 %v170
    %211 = vmatprep.subr.bf16.mxu0 0
    %212 = vmatpush2.bf16.msra.mxu0 %v169
    %213 = vmatprep.subr.bf16.mxu0 0
    %214 = vmatpush2.bf16.msra.mxu0 %v168
    %215 = vmatprep.subr.bf16.mxu0 0
    %216 = vmatpush2.bf16.msra.mxu0 %v167
    %217 = vmatprep.subr.bf16.mxu0 0
    %218 = vmatpush2.bf16.msra.mxu0 %v166
    %219 = vmatprep.subr.bf16.mxu0 0
    %220 = vmatpush2.bf16.msra.mxu0 %v165
    %221 = vmatprep.mubr.bf16.mxu0 %v90
    %222 = vmatmul.mubr.bf16.gmra.mxu0 %v89
    %v223 = vpop.f32.mrf.mxu0
    %v224 = vadd.f32 0.0, %v223
    %v225 = vpop.f32.mrf.mxu0
    %v226 = vpop.f32.mrf.mxu0
    %v227 = vadd.f32 0.0, %v226
    %v228 = vpop.f32.mrf.mxu0
    %229 = vdwg.mxu0
    %v230 = vadd.f32 %v47, %v224
    %v231 = vadd.f32 %v48, %v227
    %232 = vst [vmem:[#allocation7] sm:$0xff] %v230
    %233 = vst [vmem:[#allocation7 + $0x8] sm:$0xff] %v231
    // Predicated region
    $region22: #{tpu_custom_call.1} parent=1 // pred_check
      _
    $region23: #{tpu_custom_call.1} parent=1 // pred_check_branch
      %235 = sbr.rel (0) target = $region25
    $region24: #{tpu_custom_call.1} parent=1 // pred_region
      %s237 = ssub.s32 256, 256
      %238 = vsyncadd [#allocation4], %s237
      %s239 = sshll.u32 [#allocation7], 4
      %s240 = int_to_ptr.vmem [resolvable:$true] %s239
      %245 = dma.vmem_to_hbm [thread:$0]  %s240, 256, %s2, [#allocation4], 128, 128, 8
    $region25: #{tpu_custom_call.1} parent=1 // pred_fallthru
      _
    // Predicated region
    $region26: #{tpu_custom_call.1} parent=1 // pred_check
      _
    $region27: #{tpu_custom_call.1} parent=1 // pred_check_branch
      %247 = sbr.rel (0) target = $region29
    $region28: #{tpu_custom_call.1} parent=1 // pred_region
      %248 = dma.done [#allocation4], 256
    $region29: #{tpu_custom_call.1} parent=1 // pred_fallthru
      _
    %249 = vsyncpa [#allocation3], 1
    %250 = vsyncpa [#allocation6], 1
    %251 = vsyncpa [#allocation4], 1

</llo_original>
